<compile_context>
chip_gen: v5e
topology: v5e:2x2
jax: 0.10.0
libtpu: 0.0.40
codegen_flags: <defaults>
</compile_context>

<pallas_src>
import functools

import jax
import jax.numpy as jnp
from jax import lax
from jax.experimental import pallas as pl
from jax.experimental.pallas import tpu as pltpu


_VMEM_INPUT_BUDGET = 16 * 1024 * 1024  # bytes for 6 double-buffered input tiles
_VMEM_LIMIT_BYTES = 32 * 1024 * 1024   # scoped VMEM: > v5e default, == v6e/v7x default
_MAX_TILE_ROWS = 1024


def _split_dot(x, mat):
    """x @ mat with ~f32 accuracy via two native bf16 MXU passes.

    `mat` is a bf16 0/1 matrix; splitting x into bf16 hi/lo parts keeps the
    result accurate (~2^-18 per-element) without relying on the backend's
    default f32 matmul precision.
    """
    hi = x.astype(jnp.bfloat16)
    lo = (x - hi.astype(jnp.float32)).astype(jnp.bfloat16)
    return (jnp.dot(hi, mat, preferred_element_type=jnp.float32)
            + jnp.dot(lo, mat, preferred_element_type=jnp.float32))


def _renorm_max1(x, segsum):
    """nn.Embedding(max_norm=1, norm_type=2) renorm of the looked-up rows."""
    n2 = segsum(x * x)
    # rsqrt runs on the EUP (its own VLIW slot, idle here).
    return x * jnp.where(n2 > 1.0, lax.rsqrt(n2), 1.0)


def _transd_energy(lhs_e, lhs_t, rhs_e, rhs_t, rel_e, rel_t, segsum, rowsum, p):
    lhs_e = _renorm_max1(lhs_e, segsum)
    lhs_t = _renorm_max1(lhs_t, segsum)
    rhs_e = _renorm_max1(rhs_e, segsum)
    rhs_t = _renorm_max1(rhs_t, segsum)
    rel_e = _renorm_max1(rel_e, segsum)
    rel_t = _renorm_max1(rel_t, segsum)

    # TransD transfer projection: e + <e, t> * r_t
    lhs = lhs_e + segsum(lhs_e * lhs_t) * rel_t
    rhs = rhs_e + segsum(rhs_e * rhs_t) * rel_t
    diff = lhs + rel_e - rhs

    if p == 1:
        return rowsum(jnp.abs(diff))
    if p == 2:
        return jnp.sqrt(rowsum(diff * diff))
    return rowsum(jnp.abs(diff) ** p) ** (1.0 / p)


def _transd_kernel_packed(lhs_e_ref, lhs_t_ref, rhs_e_ref, rhs_t_ref,
                          rel_e_ref, rel_t_ref, seg_ref, red_ref,
                          out_ref, *, p):
    # Lane-packed layout: each kernel row carries `group` examples of dim D
    # (group * D == 128).  Per-example reductions become matmuls against
    # constant 0/1 segment matrices (MXU is otherwise idle in this kernel).
    seg = seg_ref[...]   # (Dp, Dp) block-diagonal ones: per-segment sum, broadcast
    red = red_ref[...]   # (Dp, G)  segment indicator:   per-segment sum, compact
    segsum = lambda x: _split_dot(x, seg)
    rowsum = lambda x: _split_dot(x, red)
    out_ref[...] = _transd_energy(
        lhs_e_ref[...], lhs_t_ref[...], rhs_e_ref[...], rhs_t_ref[...],
        rel_e_ref[...], rel_t_ref[...], segsum, rowsum, p)


def _transd_kernel_plain(lhs_e_ref, lhs_t_ref, rhs_e_ref, rhs_t_ref,
                         rel_e_ref, rel_t_ref, out_ref, *, p):
    # Unpacked layout (D >= 128 or D does not divide 128): plain lane reductions.
    rsum = lambda x: jnp.sum(x, axis=1, keepdims=True)
    out_ref[...] = _transd_energy(
        lhs_e_ref[...], lhs_t_ref[...], rhs_e_ref[...], rhs_t_ref[...],
        rel_e_ref[...], rel_t_ref[...], rsum, rsum, p)


def _choose_tile(n_rows, row_elems):
    """Rows per tile so 6 double-buffered f32 input tiles fit the VMEM budget."""
    bytes_per_row = 6 * 2 * row_elems * 4
    tb = _VMEM_INPUT_BUDGET // bytes_per_row
    tb = int(max(8, min(_MAX_TILE_ROWS, (tb // 8) * 8)))
    if n_rows <= tb:
        return n_rows, n_rows          # single tile: block == full array dim is legal
    n_pad = ((n_rows + tb - 1) // tb) * tb
    return tb, n_pad


def transd_forward(params, triplets, p=2):
    """triplets: int32 [B, 3] with columns (lhs_idx, rel_idx, rhs_idx)."""
    B = triplets.shape[0]
    D = params["ent_embeds"].shape[1]

    # Lane packing: `group` examples of dim D share one 128-lane row when possible.
    group = 128 // D if (D < 128 and 128 % D == 0) else 1
    dp = group * D

    n_rows = -(-B // group)                      # packed rows
    tile_rows, rows_pad = _choose_tile(n_rows, dp)
    b_pad = rows_pad * group

    # Pad with index 0 so the (packed) batch fills whole tiles; padded rows are
    # energies of the dummy triplet (0, 0, 0) and are sliced off below.
    pad = b_pad - B
    lhs_idx = jnp.pad(triplets[:, 0], (0, pad))
    rel_idx = jnp.pad(triplets[:, 1], (0, pad))
    rhs_idx = jnp.pad(triplets[:, 2], (0, pad))

    # Embedding gathers (XLA glue).
    # TODO(synk): for D >= 128 the gather should be fused into the kernel
    # (tables via memory_space=pl.ANY + scalar-prefetched indices + manual
    # make_async_copy) to halve HBM traffic; per-row DMAs don't pay off at tiny D.
    lhs_e = params["ent_embeds"][lhs_idx]
    lhs_t = params["ent_transfer"][lhs_idx]
    rhs_e = params["ent_embeds"][rhs_idx]
    rhs_t = params["ent_transfer"][rhs_idx]
    rel_e = params["rel_embeds"][rel_idx]
    rel_t = params["rel_transfer"][rel_idx]
    # Contiguous reshape to the packed [rows_pad, group*D] layout (free in XLA).
    inputs = [x.astype(jnp.float32).reshape(rows_pad, dp)
              for x in (lhs_e, lhs_t, rhs_e, rhs_t, rel_e, rel_t)]

    grid = (rows_pad // tile_rows,)
    row_spec = pl.BlockSpec((tile_rows, dp), lambda i: (i, 0))
    compiler_params = pltpu.CompilerParams(
        dimension_semantics=("parallel",),        # megacore sharding on v7x
        vmem_limit_bytes=_VMEM_LIMIT_BYTES)

    if group > 1:
        # Constant 0/1 segment matrices for per-example (in-row) reductions.
        seg_id = jnp.arange(dp, dtype=jnp.int32) // D
        seg = (seg_id[:, None] == seg_id[None, :]).astype(jnp.bfloat16)
        red = (seg_id[:, None] == jnp.arange(group, dtype=jnp.int32)[None, :]
               ).astype(jnp.bfloat16)
        out = pl.pallas_call(
            functools.partial(_transd_kernel_packed, p=p),
            out_shape=jax.ShapeDtypeStruct((rows_pad, group), jnp.float32),
            grid=grid,
            in_specs=[row_spec] * 6
            + [pl.BlockSpec((dp, dp), lambda i: (0, 0)),       # resident across grid
               pl.BlockSpec((dp, group), lambda i: (0, 0))],
            out_specs=pl.BlockSpec((tile_rows, group), lambda i: (i, 0)),
            compiler_params=compiler_params,
        )(*inputs, seg, red)
    else:
        out = pl.pallas_call(
            functools.partial(_transd_kernel_plain, p=p),
            out_shape=jax.ShapeDtypeStruct((rows_pad, 1), jnp.float32),
            grid=grid,
            in_specs=[row_spec] * 6,
            out_specs=pl.BlockSpec((tile_rows, 1), lambda i: (i, 0)),
            compiler_params=compiler_params,
        )(*inputs)

    return out.reshape(-1)[:B]


def transd_reference(params, triplets, p=2):
    """Pure-JAX reference (PyTorch formulas, incl. the 1e-7 renorm eps)."""
    def renorm(x):
        n = jnp.sqrt(jnp.sum(x * x, axis=1, keepdims=True))
        return x * jnp.where(n > 1.0, 1.0 / (n + 1e-7), 1.0)

    lhs_idx, rel_idx, rhs_idx = triplets[:, 0], triplets[:, 1], triplets[:, 2]
    lhs_e = renorm(params["ent_embeds"][lhs_idx])
    lhs_t = renorm(params["ent_transfer"][lhs_idx])
    rhs_e = renorm(params["ent_embeds"][rhs_idx])
    rhs_t = renorm(params["ent_transfer"][rhs_idx])
    rel_e = renorm(params["rel_embeds"][rel_idx])
    rel_t = renorm(params["rel_transfer"][rel_idx])
    lhs = lhs_e + jnp.sum(lhs_e * lhs_t, axis=1, keepdims=True) * rel_t
    rhs = rhs_e + jnp.sum(rhs_e * rhs_t, axis=1, keepdims=True) * rel_t
    diff = lhs + rel_e - rhs
    if p == 1:
        return jnp.sum(jnp.abs(diff), axis=1)
    if p == 2:
        return jnp.sqrt(jnp.sum(diff * diff, axis=1))
    return jnp.sum(jnp.abs(diff) ** p, axis=1) ** (1.0 / p)


def init_params(key, num_ent, num_rel, embed_dim):
    r = 6.0 / jnp.sqrt(jnp.float32(embed_dim))
    k1, k2, k3, k4 = jax.random.split(key, 4)
    return {
        # uniform(-r, r) as in TransD.__init__
        "ent_embeds": jax.random.uniform(k1, (num_ent, embed_dim),
                                         jnp.float32, -r, r),
        "rel_embeds": jax.random.uniform(k2, (num_rel, embed_dim),
                                         jnp.float32, -r, r),
        # nn.Embedding default init: N(0, 1)
        "ent_transfer": jax.random.normal(k3, (num_ent, embed_dim), jnp.float32),
        "rel_transfer": jax.random.normal(k4, (num_rel, embed_dim), jnp.float32),
    }


def _make_triplets(key, batch, num_ent, num_rel):
    kl, kr, kh = jax.random.split(key, 3)
    return jnp.stack(
        [jax.random.randint(kl, (batch,), 0, num_ent),
         jax.random.randint(kr, (batch,), 0, num_rel),
         jax.random.randint(kh, (batch,), 0, num_ent)],
        axis=1).astype(jnp.int32)


if __name__ == "__main__":
    key = jax.random.PRNGKey(0)
    kp1, kt1, kp2, kt2 = jax.random.split(key, 4)

    # Case 1: small embedding dim (D=32) -> exercises the lane-packed kernel.
    num_ent, num_rel, embed_dim, p, batch = 64, 16, 32, 2, 8
    params = init_params(kp1, num_ent, num_rel, embed_dim)
    triplets = _make_triplets(kt1, batch, num_ent, num_rel)
    enrgs = jax.block_until_ready(transd_forward(params, triplets, p=p))
    ref = transd_reference(params, triplets, p=p)
    assert enrgs.shape == (batch,)
    assert jnp.allclose(enrgs, ref, rtol=1e-3, atol=1e-4), (
        float(jnp.max(jnp.abs(enrgs - ref))))

    # Case 2: D=128 -> exercises the unpacked kernel path.
    num_ent2, num_rel2, embed_dim2, batch2 = 32, 8, 128, 16
    params2 = init_params(kp2, num_ent2, num_rel2, embed_dim2)
    triplets2 = _make_triplets(kt2, batch2, num_ent2, num_rel2)
    enrgs2 = jax.block_until_ready(transd_forward(params2, triplets2, p=p))
    ref2 = transd_reference(params2, triplets2, p=p)
    assert enrgs2.shape == (batch2,)
    assert jnp.allclose(enrgs2, ref2, rtol=1e-3, atol=1e-4), (
        float(jnp.max(jnp.abs(enrgs2 - ref2))))

    print("KERNEL_OK")
</pallas_src>

<mosaic_0001>
module attributes {stable_mosaic.version = 11 : i64} {
  func.func @_transd_kernel_packed(%arg0: i32, %arg1: memref<2x128xf32, #tpu.memory_space<vmem>>, %arg2: memref<2x128xf32, #tpu.memory_space<vmem>>, %arg3: memref<2x128xf32, #tpu.memory_space<vmem>>, %arg4: memref<2x128xf32, #tpu.memory_space<vmem>>, %arg5: memref<2x128xf32, #tpu.memory_space<vmem>>, %arg6: memref<2x128xf32, #tpu.memory_space<vmem>>, %arg7: memref<128x128xbf16, #tpu.memory_space<vmem>>, %arg8: memref<128x4xbf16, #tpu.memory_space<vmem>>, %arg9: memref<2x4xf32, #tpu.memory_space<vmem>>) attributes {dimension_semantics = [#tpu.dimension_semantics<parallel>], iteration_bounds = array<i64: 1>, scalar_prefetch = 0 : i64, scratch_operands = 0 : i64, tpu.core_type = #tpu.core_type<tc>, window_params = [{transform_indices = @transform_0, window_bounds = array<i64: 2, 128>}, {transform_indices = @transform_1, window_bounds = array<i64: 2, 128>}, {transform_indices = @transform_2, window_bounds = array<i64: 2, 128>}, {transform_indices = @transform_3, window_bounds = array<i64: 2, 128>}, {transform_indices = @transform_4, window_bounds = array<i64: 2, 128>}, {transform_indices = @transform_5, window_bounds = array<i64: 2, 128>}, {pipeline_mode = #tpu.pipeline_mode<synchronous>, transform_indices = @transform_6, window_bounds = array<i64: 128, 128>}, {pipeline_mode = #tpu.pipeline_mode<synchronous>, transform_indices = @transform_7, window_bounds = array<i64: 128, 4>}, {transform_indices = @transform_8, window_bounds = array<i64: 2, 4>}]} {
    %c0 = arith.constant 0 : index
    %c0_0 = arith.constant 0 : index
    %0 = vector.load %arg7[%c0, %c0_0] : memref<128x128xbf16, #tpu.memory_space<vmem>>, vector<128x128xbf16>
    %c0_1 = arith.constant 0 : index
    %c0_2 = arith.constant 0 : index
    %1 = vector.load %arg8[%c0_1, %c0_2] : memref<128x4xbf16, #tpu.memory_space<vmem>>, vector<128x4xbf16>
    %c0_3 = arith.constant 0 : index
    %c0_4 = arith.constant 0 : index
    %2 = vector.load %arg1[%c0_3, %c0_4] : memref<2x128xf32, #tpu.memory_space<vmem>>, vector<2x128xf32>
    %c0_5 = arith.constant 0 : index
    %c0_6 = arith.constant 0 : index
    %3 = vector.load %arg2[%c0_5, %c0_6] : memref<2x128xf32, #tpu.memory_space<vmem>>, vector<2x128xf32>
    %c0_7 = arith.constant 0 : index
    %c0_8 = arith.constant 0 : index
    %4 = vector.load %arg3[%c0_7, %c0_8] : memref<2x128xf32, #tpu.memory_space<vmem>>, vector<2x128xf32>
    %c0_9 = arith.constant 0 : index
    %c0_10 = arith.constant 0 : index
    %5 = vector.load %arg4[%c0_9, %c0_10] : memref<2x128xf32, #tpu.memory_space<vmem>>, vector<2x128xf32>
    %c0_11 = arith.constant 0 : index
    %c0_12 = arith.constant 0 : index
    %6 = vector.load %arg5[%c0_11, %c0_12] : memref<2x128xf32, #tpu.memory_space<vmem>>, vector<2x128xf32>
    %c0_13 = arith.constant 0 : index
    %c0_14 = arith.constant 0 : index
    %7 = vector.load %arg6[%c0_13, %c0_14] : memref<2x128xf32, #tpu.memory_space<vmem>>, vector<2x128xf32>
    %8 = arith.mulf %2, %2 : vector<2x128xf32>
    %9 = arith.truncf %8 : vector<2x128xf32> to vector<2x128xbf16>
    %10 = arith.extf %9 : vector<2x128xbf16> to vector<2x128xf32>
    %11 = arith.subf %8, %10 : vector<2x128xf32>
    %12 = arith.truncf %11 : vector<2x128xf32> to vector<2x128xbf16>
    %cst = arith.constant dense<0.000000e+00> : vector<2x128xf32>
    %13 = tpu.matmul %9, %0, %cst {dimension_numbers = #tpu.dot_dimension_numbers<[1], [0], [0], [1], [0, 0, 1, 1], [], []>} : vector<2x128xbf16>, vector<128x128xbf16>, vector<2x128xf32> -> vector<2x128xf32>
    %cst_15 = arith.constant dense<0.000000e+00> : vector<2x128xf32>
    %14 = tpu.matmul %12, %0, %cst_15 {dimension_numbers = #tpu.dot_dimension_numbers<[1], [0], [0], [1], [0, 0, 1, 1], [], []>} : vector<2x128xbf16>, vector<128x128xbf16>, vector<2x128xf32> -> vector<2x128xf32>
    %15 = arith.addf %13, %14 : vector<2x128xf32>
    %cst_16 = arith.constant 1.000000e+00 : f32
    %16 = vector.broadcast %cst_16 : f32 to vector<2x128xf32>
    %17 = arith.cmpf ogt, %15, %16 : vector<2x128xf32>
    %18 = math.rsqrt %15 : vector<2x128xf32>
    %cst_17 = arith.constant 1.000000e+00 : f32
    %19 = vector.broadcast %cst_17 : f32 to vector<2x128xf32>
    %20 = arith.select %17, %18, %19 : vector<2x128xi1>, vector<2x128xf32>
    %21 = arith.mulf %2, %20 : vector<2x128xf32>
    %22 = arith.mulf %3, %3 : vector<2x128xf32>
    %23 = arith.truncf %22 : vector<2x128xf32> to vector<2x128xbf16>
    %24 = arith.extf %23 : vector<2x128xbf16> to vector<2x128xf32>
    %25 = arith.subf %22, %24 : vector<2x128xf32>
    %26 = arith.truncf %25 : vector<2x128xf32> to vector<2x128xbf16>
    %cst_18 = arith.constant dense<0.000000e+00> : vector<2x128xf32>
    %27 = tpu.matmul %23, %0, %cst_18 {dimension_numbers = #tpu.dot_dimension_numbers<[1], [0], [0], [1], [0, 0, 1, 1], [], []>} : vector<2x128xbf16>, vector<128x128xbf16>, vector<2x128xf32> -> vector<2x128xf32>
    %cst_19 = arith.constant dense<0.000000e+00> : vector<2x128xf32>
    %28 = tpu.matmul %26, %0, %cst_19 {dimension_numbers = #tpu.dot_dimension_numbers<[1], [0], [0], [1], [0, 0, 1, 1], [], []>} : vector<2x128xbf16>, vector<128x128xbf16>, vector<2x128xf32> -> vector<2x128xf32>
    %29 = arith.addf %27, %28 : vector<2x128xf32>
    %cst_20 = arith.constant 1.000000e+00 : f32
    %30 = vector.broadcast %cst_20 : f32 to vector<2x128xf32>
    %31 = arith.cmpf ogt, %29, %30 : vector<2x128xf32>
    %32 = math.rsqrt %29 : vector<2x128xf32>
    %cst_21 = arith.constant 1.000000e+00 : f32
    %33 = vector.broadcast %cst_21 : f32 to vector<2x128xf32>
    %34 = arith.select %31, %32, %33 : vector<2x128xi1>, vector<2x128xf32>
    %35 = arith.mulf %3, %34 : vector<2x128xf32>
    %36 = arith.mulf %4, %4 : vector<2x128xf32>
    %37 = arith.truncf %36 : vector<2x128xf32> to vector<2x128xbf16>
    %38 = arith.extf %37 : vector<2x128xbf16> to vector<2x128xf32>
    %39 = arith.subf %36, %38 : vector<2x128xf32>
    %40 = arith.truncf %39 : vector<2x128xf32> to vector<2x128xbf16>
    %cst_22 = arith.constant dense<0.000000e+00> : vector<2x128xf32>
    %41 = tpu.matmul %37, %0, %cst_22 {dimension_numbers = #tpu.dot_dimension_numbers<[1], [0], [0], [1], [0, 0, 1, 1], [], []>} : vector<2x128xbf16>, vector<128x128xbf16>, vector<2x128xf32> -> vector<2x128xf32>
    %cst_23 = arith.constant dense<0.000000e+00> : vector<2x128xf32>
    %42 = tpu.matmul %40, %0, %cst_23 {dimension_numbers = #tpu.dot_dimension_numbers<[1], [0], [0], [1], [0, 0, 1, 1], [], []>} : vector<2x128xbf16>, vector<128x128xbf16>, vector<2x128xf32> -> vector<2x128xf32>
    %43 = arith.addf %41, %42 : vector<2x128xf32>
    %cst_24 = arith.constant 1.000000e+00 : f32
    %44 = vector.broadcast %cst_24 : f32 to vector<2x128xf32>
    %45 = arith.cmpf ogt, %43, %44 : vector<2x128xf32>
    %46 = math.rsqrt %43 : vector<2x128xf32>
    %cst_25 = arith.constant 1.000000e+00 : f32
    %47 = vector.broadcast %cst_25 : f32 to vector<2x128xf32>
    %48 = arith.select %45, %46, %47 : vector<2x128xi1>, vector<2x128xf32>
    %49 = arith.mulf %4, %48 : vector<2x128xf32>
    %50 = arith.mulf %5, %5 : vector<2x128xf32>
    %51 = arith.truncf %50 : vector<2x128xf32> to vector<2x128xbf16>
    %52 = arith.extf %51 : vector<2x128xbf16> to vector<2x128xf32>
    %53 = arith.subf %50, %52 : vector<2x128xf32>
    %54 = arith.truncf %53 : vector<2x128xf32> to vector<2x128xbf16>
    %cst_26 = arith.constant dense<0.000000e+00> : vector<2x128xf32>
    %55 = tpu.matmul %51, %0, %cst_26 {dimension_numbers = #tpu.dot_dimension_numbers<[1], [0], [0], [1], [0, 0, 1, 1], [], []>} : vector<2x128xbf16>, vector<128x128xbf16>, vector<2x128xf32> -> vector<2x128xf32>
    %cst_27 = arith.constant dense<0.000000e+00> : vector<2x128xf32>
    %56 = tpu.matmul %54, %0, %cst_27 {dimension_numbers = #tpu.dot_dimension_numbers<[1], [0], [0], [1], [0, 0, 1, 1], [], []>} : vector<2x128xbf16>, vector<128x128xbf16>, vector<2x128xf32> -> vector<2x128xf32>
    %57 = arith.addf %55, %56 : vector<2x128xf32>
    %cst_28 = arith.constant 1.000000e+00 : f32
    %58 = vector.broadcast %cst_28 : f32 to vector<2x128xf32>
    %59 = arith.cmpf ogt, %57, %58 : vector<2x128xf32>
    %60 = math.rsqrt %57 : vector<2x128xf32>
    %cst_29 = arith.constant 1.000000e+00 : f32
    %61 = vector.broadcast %cst_29 : f32 to vector<2x128xf32>
    %62 = arith.select %59, %60, %61 : vector<2x128xi1>, vector<2x128xf32>
    %63 = arith.mulf %5, %62 : vector<2x128xf32>
    %64 = arith.mulf %6, %6 : vector<2x128xf32>
    %65 = arith.truncf %64 : vector<2x128xf32> to vector<2x128xbf16>
    %66 = arith.extf %65 : vector<2x128xbf16> to vector<2x128xf32>
    %67 = arith.subf %64, %66 : vector<2x128xf32>
    %68 = arith.truncf %67 : vector<2x128xf32> to vector<2x128xbf16>
    %cst_30 = arith.constant dense<0.000000e+00> : vector<2x128xf32>
    %69 = tpu.matmul %65, %0, %cst_30 {dimension_numbers = #tpu.dot_dimension_numbers<[1], [0], [0], [1], [0, 0, 1, 1], [], []>} : vector<2x128xbf16>, vector<128x128xbf16>, vector<2x128xf32> -> vector<2x128xf32>
    %cst_31 = arith.constant dense<0.000000e+00> : vector<2x128xf32>
    %70 = tpu.matmul %68, %0, %cst_31 {dimension_numbers = #tpu.dot_dimension_numbers<[1], [0], [0], [1], [0, 0, 1, 1], [], []>} : vector<2x128xbf16>, vector<128x128xbf16>, vector<2x128xf32> -> vector<2x128xf32>
    %71 = arith.addf %69, %70 : vector<2x128xf32>
    %cst_32 = arith.constant 1.000000e+00 : f32
    %72 = vector.broadcast %cst_32 : f32 to vector<2x128xf32>
    %73 = arith.cmpf ogt, %71, %72 : vector<2x128xf32>
    %74 = math.rsqrt %71 : vector<2x128xf32>
    %cst_33 = arith.constant 1.000000e+00 : f32
    %75 = vector.broadcast %cst_33 : f32 to vector<2x128xf32>
    %76 = arith.select %73, %74, %75 : vector<2x128xi1>, vector<2x128xf32>
    %77 = arith.mulf %6, %76 : vector<2x128xf32>
    %78 = arith.mulf %7, %7 : vector<2x128xf32>
    %79 = arith.truncf %78 : vector<2x128xf32> to vector<2x128xbf16>
    %80 = arith.extf %79 : vector<2x128xbf16> to vector<2x128xf32>
    %81 = arith.subf %78, %80 : vector<2x128xf32>
    %82 = arith.truncf %81 : vector<2x128xf32> to vector<2x128xbf16>
    %cst_34 = arith.constant dense<0.000000e+00> : vector<2x128xf32>
    %83 = tpu.matmul %79, %0, %cst_34 {dimension_numbers = #tpu.dot_dimension_numbers<[1], [0], [0], [1], [0, 0, 1, 1], [], []>} : vector<2x128xbf16>, vector<128x128xbf16>, vector<2x128xf32> -> vector<2x128xf32>
    %cst_35 = arith.constant dense<0.000000e+00> : vector<2x128xf32>
    %84 = tpu.matmul %82, %0, %cst_35 {dimension_numbers = #tpu.dot_dimension_numbers<[1], [0], [0], [1], [0, 0, 1, 1], [], []>} : vector<2x128xbf16>, vector<128x128xbf16>, vector<2x128xf32> -> vector<2x128xf32>
    %85 = arith.addf %83, %84 : vector<2x128xf32>
    %cst_36 = arith.constant 1.000000e+00 : f32
    %86 = vector.broadcast %cst_36 : f32 to vector<2x128xf32>
    %87 = arith.cmpf ogt, %85, %86 : vector<2x128xf32>
    %88 = math.rsqrt %85 : vector<2x128xf32>
    %cst_37 = arith.constant 1.000000e+00 : f32
    %89 = vector.broadcast %cst_37 : f32 to vector<2x128xf32>
    %90 = arith.select %87, %88, %89 : vector<2x128xi1>, vector<2x128xf32>
    %91 = arith.mulf %7, %90 : vector<2x128xf32>
    %92 = arith.mulf %21, %35 : vector<2x128xf32>
    %93 = arith.truncf %92 : vector<2x128xf32> to vector<2x128xbf16>
    %94 = arith.extf %93 : vector<2x128xbf16> to vector<2x128xf32>
    %95 = arith.subf %92, %94 : vector<2x128xf32>
    %96 = arith.truncf %95 : vector<2x128xf32> to vector<2x128xbf16>
    %cst_38 = arith.constant dense<0.000000e+00> : vector<2x128xf32>
    %97 = tpu.matmul %93, %0, %cst_38 {dimension_numbers = #tpu.dot_dimension_numbers<[1], [0], [0], [1], [0, 0, 1, 1], [], []>} : vector<2x128xbf16>, vector<128x128xbf16>, vector<2x128xf32> -> vector<2x128xf32>
    %cst_39 = arith.constant dense<0.000000e+00> : vector<2x128xf32>
    %98 = tpu.matmul %96, %0, %cst_39 {dimension_numbers = #tpu.dot_dimension_numbers<[1], [0], [0], [1], [0, 0, 1, 1], [], []>} : vector<2x128xbf16>, vector<128x128xbf16>, vector<2x128xf32> -> vector<2x128xf32>
    %99 = arith.addf %97, %98 : vector<2x128xf32>
    %100 = arith.mulf %99, %91 : vector<2x128xf32>
    %101 = arith.addf %21, %100 : vector<2x128xf32>
    %102 = arith.mulf %49, %63 : vector<2x128xf32>
    %103 = arith.truncf %102 : vector<2x128xf32> to vector<2x128xbf16>
    %104 = arith.extf %103 : vector<2x128xbf16> to vector<2x128xf32>
    %105 = arith.subf %102, %104 : vector<2x128xf32>
    %106 = arith.truncf %105 : vector<2x128xf32> to vector<2x128xbf16>
    %cst_40 = arith.constant dense<0.000000e+00> : vector<2x128xf32>
    %107 = tpu.matmul %103, %0, %cst_40 {dimension_numbers = #tpu.dot_dimension_numbers<[1], [0], [0], [1], [0, 0, 1, 1], [], []>} : vector<2x128xbf16>, vector<128x128xbf16>, vector<2x128xf32> -> vector<2x128xf32>
    %cst_41 = arith.constant dense<0.000000e+00> : vector<2x128xf32>
    %108 = tpu.matmul %106, %0, %cst_41 {dimension_numbers = #tpu.dot_dimension_numbers<[1], [0], [0], [1], [0, 0, 1, 1], [], []>} : vector<2x128xbf16>, vector<128x128xbf16>, vector<2x128xf32> -> vector<2x128xf32>
    %109 = arith.addf %107, %108 : vector<2x128xf32>
    %110 = arith.mulf %109, %91 : vector<2x128xf32>
    %111 = arith.addf %49, %110 : vector<2x128xf32>
    %112 = arith.addf %101, %77 : vector<2x128xf32>
    %113 = arith.subf %112, %111 : vector<2x128xf32>
    %114 = arith.mulf %113, %113 : vector<2x128xf32>
    %115 = arith.truncf %114 : vector<2x128xf32> to vector<2x128xbf16>
    %116 = arith.extf %115 : vector<2x128xbf16> to vector<2x128xf32>
    %117 = arith.subf %114, %116 : vector<2x128xf32>
    %118 = arith.truncf %117 : vector<2x128xf32> to vector<2x128xbf16>
    %cst_42 = arith.constant dense<0.000000e+00> : vector<2x4xf32>
    %119 = tpu.matmul %115, %1, %cst_42 {dimension_numbers = #tpu.dot_dimension_numbers<[1], [0], [0], [1], [0, 0, 1, 1], [], []>} : vector<2x128xbf16>, vector<128x4xbf16>, vector<2x4xf32> -> vector<2x4xf32>
    %cst_43 = arith.constant dense<0.000000e+00> : vector<2x4xf32>
    %120 = tpu.matmul %118, %1, %cst_43 {dimension_numbers = #tpu.dot_dimension_numbers<[1], [0], [0], [1], [0, 0, 1, 1], [], []>} : vector<2x128xbf16>, vector<128x4xbf16>, vector<2x4xf32> -> vector<2x4xf32>
    %121 = arith.addf %119, %120 : vector<2x4xf32>
    %122 = math.sqrt %121 : vector<2x4xf32>
    %c0_44 = arith.constant 0 : index
    %c0_45 = arith.constant 0 : index
    %123 = vector.load %arg9[%c0_44, %c0_45] : memref<2x4xf32, #tpu.memory_space<vmem>>, vector<2x4xf32>
    tpu.vector_store %arg9[%c0_44, %c0_45], %122 {strides = array<i32>} : memref<2x4xf32, #tpu.memory_space<vmem>>, vector<2x4xf32>,
    return
  }
  func.func @transform_0(%arg0: i32) -> (i32, i32) {
    %c0_i32 = arith.constant 0 : i32
    %c0_i32_0 = arith.constant 0 : i32
    return %arg0, %c0_i32 : i32, i32
  }
  func.func @transform_1(%arg0: i32) -> (i32, i32) {
    %c0_i32 = arith.constant 0 : i32
    %c0_i32_0 = arith.constant 0 : i32
    return %arg0, %c0_i32 : i32, i32
  }
  func.func @transform_2(%arg0: i32) -> (i32, i32) {
    %c0_i32 = arith.constant 0 : i32
    %c0_i32_0 = arith.constant 0 : i32
    return %arg0, %c0_i32 : i32, i32
  }
  func.func @transform_3(%arg0: i32) -> (i32, i32) {
    %c0_i32 = arith.constant 0 : i32
    %c0_i32_0 = arith.constant 0 : i32
    return %arg0, %c0_i32 : i32, i32
  }
  func.func @transform_4(%arg0: i32) -> (i32, i32) {
    %c0_i32 = arith.constant 0 : i32
    %c0_i32_0 = arith.constant 0 : i32
    return %arg0, %c0_i32 : i32, i32
  }
  func.func @transform_5(%arg0: i32) -> (i32, i32) {
    %c0_i32 = arith.constant 0 : i32
    %c0_i32_0 = arith.constant 0 : i32
    return %arg0, %c0_i32 : i32, i32
  }
  func.func @transform_6(%arg0: i32) -> (i32, i32) {
    %c0_i32 = arith.constant 0 : i32
    %c0_i32_0 = arith.constant 0 : i32
    %c0_i32_1 = arith.constant 0 : i32
    return %c0_i32, %c0_i32_0 : i32, i32
  }
  func.func @transform_7(%arg0: i32) -> (i32, i32) {
    %c0_i32 = arith.constant 0 : i32
    %c0_i32_0 = arith.constant 0 : i32
    %c0_i32_1 = arith.constant 0 : i32
    return %c0_i32, %c0_i32_0 : i32, i32
  }
  func.func @transform_8(%arg0: i32) -> (i32, i32) {
    %c0_i32 = arith.constant 0 : i32
    %c0_i32_0 = arith.constant 0 : i32
    return %arg0, %c0_i32 : i32, i32
  }
}

</mosaic_0001>

<llo_original>
// kernel: tpu_custom_call.1
$region0: #{tpu_custom_call.1}
  #allocation0 [shape = 'u32[]', space=smem, size = 0x4, offset = 0x4, fixed_abs, tag = 'smem constant byte address 0x4 - core index']
  #allocation1 [shape = 'u32[72,128]{1,0:T(1,128)}', space=vmem, size = 0x9000, scoped, tag = 'internal scratch']
  %s0 = inlined_call_operand.vmem [shape: f32[2,128], index: 0, kind: input, shape index: {}]
  %s1 = inlined_call_operand.hbm [shape: f32[2,128], index: 1, kind: input, shape index: {}]
  %s2 = inlined_call_operand.hbm [shape: f32[2,128], index: 2, kind: input, shape index: {}]
  %s3 = inlined_call_operand.hbm [shape: f32[2,128], index: 3, kind: input, shape index: {}]
  %s4 = inlined_call_operand.hbm [shape: f32[2,128], index: 4, kind: input, shape index: {}]
  %s5 = inlined_call_operand.vmem [shape: f32[2,128], index: 5, kind: input, shape index: {}]
  %s6 = inlined_call_operand.vmem [shape: bf16[128,128], index: 6, kind: input, shape index: {}]
  %s7 = inlined_call_operand.vmem [shape: bf16[128,4], index: 7, kind: input, shape index: {}]
  %s8 = inlined_call_operand.hbm [shape: f32[2,4], index: 8, kind: output, shape index: {}]
  %s9 = sld [smem:[#allocation0]]
  $region58: #{tpu_custom_call.1} parent=0
    _
  %s11 = ssub.s32 1, %s9
  %s12 = scalar_select 0, %s11, %s9
  $region1: #{tpu_custom_call.1} parent=0
    #allocation2 [shape = 'u8[1024]{0}', space=vmem, size = 0x400, scoped, tag = 'input window, operand 1, single buffered']
    #allocation3 [shape = 's32[1]{0}', space=sflag, size = 0x4, scoped, tag = 'scoped memory for tpu_custom_call.1']
    #allocation4 [shape = 's32[1]{0}', space=sflag, size = 0x4, scoped, tag = 'scoped memory for tpu_custom_call.1']
    #allocation5 [shape = 'u8[1024]{0}', space=vmem, size = 0x400, scoped, tag = 'input window, operand 2, single buffered']
    #allocation6 [shape = 's32[1]{0}', space=sflag, size = 0x4, scoped, tag = 'scoped memory for tpu_custom_call.1']
    #allocation7 [shape = 'u8[1024]{0}', space=vmem, size = 0x400, scoped, tag = 'input window, operand 3, single buffered']
    #allocation8 [shape = 'u8[1024]{0}', space=vmem, size = 0x400, scoped, tag = 'input window, operand 4, single buffered']
    #allocation9 [shape = 's32[1]{0}', space=sflag, size = 0x4, scoped, tag = 'scoped memory for tpu_custom_call.1']
    #allocation10 [shape = 'u8[1024]{0}', space=vmem, size = 0x400, scoped, tag = 'output window, operand 0, single buffered']
    %13 = vsyncpa [#allocation3], 0
    %14 = vsyncpa [#allocation6], 0
    %15 = vsyncpa [#allocation9], 0
    %16 = vsyncpa [#allocation4], 0
    // Predicated region
    $region2: #{tpu_custom_call.1} parent=1 // pred_check
      _
    $region3: #{tpu_custom_call.1} parent=1 // pred_check_branch
      %18 = sbr.rel (0) target = $region5
    $region4: #{tpu_custom_call.1} parent=1 // pred_region
      _
    $region5: #{tpu_custom_call.1} parent=1 // pred_fallthru
      _
    // Predicated region
    $region6: #{tpu_custom_call.1} parent=1 // pred_check
      _
    $region7: #{tpu_custom_call.1} parent=1 // pred_check_branch
      %20 = sbr.rel (0) target = $region9
    $region8: #{tpu_custom_call.1} parent=1 // pred_region
      %22 = vsyncadd [#allocation3], 0
      %s24 = sshll.u32 %s1, 4
      %s25 = int_to_ptr.hbm [resolvable:$true] %s24
      %s26 = sshll.u32 [#allocation2], 4
      %s27 = int_to_ptr.vmem [resolvable:$true] %s26
      %29 = dma.hbm_to_vmem [thread:$0]  %s25, 32, %s27, [#allocation3]
    $region9: #{tpu_custom_call.1} parent=1 // pred_fallthru
      _
    // Predicated region
    $region10: #{tpu_custom_call.1} parent=1 // pred_check
      _
    $region11: #{tpu_custom_call.1} parent=1 // pred_check_branch
      %31 = sbr.rel (0) target = $region13
    $region12: #{tpu_custom_call.1} parent=1 // pred_region
      %33 = vsyncadd [#allocation6], 0
      %s35 = sshll.u32 %s2, 4
      %s36 = int_to_ptr.hbm [resolvable:$true] %s35
      %s37 = sshll.u32 [#allocation5], 4
      %s38 = int_to_ptr.vmem [resolvable:$true] %s37
      %40 = dma.hbm_to_vmem [thread:$0]  %s36, 32, %s38, [#allocation6]
    $region13: #{tpu_custom_call.1} parent=1 // pred_fallthru
      _
    // Predicated region
    $region14: #{tpu_custom_call.1} parent=1 // pred_check
      _
    $region15: #{tpu_custom_call.1} parent=1 // pred_check_branch
      %42 = sbr.rel (0) target = $region17
    $region16: #{tpu_custom_call.1} parent=1 // pred_region
      %44 = vsyncadd [#allocation6], 0
      %s46 = sshll.u32 %s3, 4
      %s47 = int_to_ptr.hbm [resolvable:$true] %s46
      %s48 = sshll.u32 [#allocation7], 4
      %s49 = int_to_ptr.vmem [resolvable:$true] %s48
      %51 = dma.hbm_to_vmem [thread:$0]  %s47, 32, %s49, [#allocation6]
    $region17: #{tpu_custom_call.1} parent=1 // pred_fallthru
      _
    // Predicated region
    $region18: #{tpu_custom_call.1} parent=1 // pred_check
      _
    $region19: #{tpu_custom_call.1} parent=1 // pred_check_branch
      %53 = sbr.rel (0) target = $region21
    $region20: #{tpu_custom_call.1} parent=1 // pred_region
      %55 = vsyncadd [#allocation9], 0
      %s57 = sshll.u32 %s4, 4
      %s58 = int_to_ptr.hbm [resolvable:$true] %s57
      %s59 = sshll.u32 [#allocation8], 4
      %s60 = int_to_ptr.vmem [resolvable:$true] %s59
      %62 = dma.hbm_to_vmem [thread:$0]  %s58, 32, %s60, [#allocation9]
    $region21: #{tpu_custom_call.1} parent=1 // pred_fallthru
      _
    // Predicated region
    $region22: #{tpu_custom_call.1} parent=1 // pred_check
      _
    $region23: #{tpu_custom_call.1} parent=1 // pred_check_branch
      %64 = sbr.rel (0) target = $region25
    $region24: #{tpu_custom_call.1} parent=1 // pred_region
      _
    $region25: #{tpu_custom_call.1} parent=1 // pred_fallthru
      _
    // Predicated region
    $region26: #{tpu_custom_call.1} parent=1 // pred_check
      _
    $region27: #{tpu_custom_call.1} parent=1 // pred_check_branch
      %66 = sbr.rel (0) target = $region29
    $region28: #{tpu_custom_call.1} parent=1 // pred_region
      _
    $region29: #{tpu_custom_call.1} parent=1 // pred_fallthru
      _
    // Predicated region
    $region30: #{tpu_custom_call.1} parent=1 // pred_check
      _
    $region31: #{tpu_custom_call.1} parent=1 // pred_check_branch
      %68 = sbr.rel (0) target = $region33
    $region32: #{tpu_custom_call.1} parent=1 // pred_region
      _
    $region33: #{tpu_custom_call.1} parent=1 // pred_fallthru
      _
    // Predicated region
    $region34: #{tpu_custom_call.1} parent=1 // pred_check
      _
    $region35: #{tpu_custom_call.1} parent=1 // pred_check_branch
      %70 = sbr.rel (0) target = $region37
    $region36: #{tpu_custom_call.1} parent=1 // pred_region
      %72 = dma.done [#allocation3], 32
    $region37: #{tpu_custom_call.1} parent=1 // pred_fallthru
      _
    // Predicated region
    $region38: #{tpu_custom_call.1} parent=1 // pred_check
      _
    $region39: #{tpu_custom_call.1} parent=1 // pred_check_branch
      %74 = sbr.rel (0) target = $region41
    $region40: #{tpu_custom_call.1} parent=1 // pred_region
      %76 = dma.done [#allocation6], 32
    $region41: #{tpu_custom_call.1} parent=1 // pred_fallthru
      _
    // Predicated region
    $region42: #{tpu_custom_call.1} parent=1 // pred_check
      _
    $region43: #{tpu_custom_call.1} parent=1 // pred_check_branch
      %78 = sbr.rel (0) target = $region45
    $region44: #{tpu_custom_call.1} parent=1 // pred_region
      %80 = dma.done [#allocation6], 32
    $region45: #{tpu_custom_call.1} parent=1 // pred_fallthru
      _
    // Predicated region
    $region46: #{tpu_custom_call.1} parent=1 // pred_check
      _
    $region47: #{tpu_custom_call.1} parent=1 // pred_check_branch
      %82 = sbr.rel (0) target = $region49
    $region48: #{tpu_custom_call.1} parent=1 // pred_region
      %84 = dma.done [#allocation9], 32
    $region49: #{tpu_custom_call.1} parent=1 // pred_fallthru
      _
    %v85 = vld [vmem:[%s6] sm:$0xf]
    %v86 = vld [vmem:[%s6 + $0x4] sm:$0xf]
    %v87 = vld [vmem:[%s6 + $0x8] sm:$0xf]
    %v88 = vld [vmem:[%s6 + $0xc] sm:$0xf]
    %v89 = vld [vmem:[%s6 + $0x10] sm:$0xf]
    %v90 = vld [vmem:[%s6 + $0x14] sm:$0xf]
    %v91 = vld [vmem:[%s6 + $0x18] sm:$0xf]
    %v92 = vld [vmem:[%s6 + $0x1c] sm:$0xf]
    %v93 = vld [vmem:[%s6 + $0x20] sm:$0xf]
    %v94 = vld [vmem:[%s6 + $0x24] sm:$0xf]
    %v95 = vld [vmem:[%s6 + $0x28] sm:$0xf]
    %v96 = vld [vmem:[%s6 + $0x2c] sm:$0xf]
    %v97 = vld [vmem:[%s6 + $0x30] sm:$0xf]
    %v98 = vld [vmem:[%s6 + $0x34] sm:$0xf]
    %v99 = vld [vmem:[%s6 + $0x38] sm:$0xf]
    %v100 = vld [vmem:[%s6 + $0x3c] sm:$0xf]
    %v101 = vld [vmem:[%s7] sm:$0xf]
    %v102 = vld [vmem:[%s7 + $0x4] sm:$0xf]
    %v103 = vld [vmem:[%s7 + $0x8] sm:$0xf]
    %v104 = vld [vmem:[%s7 + $0xc] sm:$0xf]
    %v105 = vld [vmem:[%s7 + $0x10] sm:$0xf]
    %v106 = vld [vmem:[%s7 + $0x14] sm:$0xf]
    %v107 = vld [vmem:[%s7 + $0x18] sm:$0xf]
    %v108 = vld [vmem:[%s7 + $0x1c] sm:$0xf]
    %v109 = vld [vmem:[%s7 + $0x20] sm:$0xf]
    %v110 = vld [vmem:[%s7 + $0x24] sm:$0xf]
    %v111 = vld [vmem:[%s7 + $0x28] sm:$0xf]
    %v112 = vld [vmem:[%s7 + $0x2c] sm:$0xf]
    %v113 = vld [vmem:[%s7 + $0x30] sm:$0xf]
    %v114 = vld [vmem:[%s7 + $0x34] sm:$0xf]
    %v115 = vld [vmem:[%s7 + $0x38] sm:$0xf]
    %v116 = vld [vmem:[%s7 + $0x3c] sm:$0xf]
    %v117 = vld [vmem:[%s0] sm:$0x3]
    %v118 = vld [vmem:[#allocation2] sm:$0x3]
    %v119 = vld [vmem:[#allocation5] sm:$0x3]
    %v120 = vld [vmem:[#allocation7] sm:$0x3]
    %v121 = vld [vmem:[#allocation8] sm:$0x3]
    %v122 = vld [vmem:[%s5] sm:$0x3]
    %v123 = vmul.f32 %v117, %v117
    %v124 = vpack.c.bf16 %v123, %v123
    %v125 = vunpack.c.l.bf16 %v124
    %v126 = vsub.f32 %v123, %v125
    %v127 = vpack.c.bf16 %v126, %v126
    %v144 = vunpack.c.l.b16 %v85
    %v145 = vunpack.c.l.b16 %v86
    %v146 = vunpack.c.l.b16 %v87
    %v147 = vunpack.c.l.b16 %v88
    %v148 = vunpack.c.l.b16 %v89
    %v149 = vunpack.c.l.b16 %v90
    %v150 = vunpack.c.l.b16 %v91
    %v151 = vunpack.c.l.b16 %v92
    %v152 = vunpack.c.l.b16 %v93
    %v153 = vunpack.c.l.b16 %v94
    %v154 = vunpack.c.l.b16 %v95
    %v155 = vunpack.c.l.b16 %v96
    %v156 = vunpack.c.l.b16 %v97
    %v157 = vunpack.c.l.b16 %v98
    %v158 = vunpack.c.l.b16 %v99
    %v159 = vunpack.c.l.b16 %v100
    %v160 = vpack.c.b16 %v145, %v144
    %v161 = vpack.c.b16 %v147, %v146
    %v162 = vpack.c.b16 %v149, %v148
    %v163 = vpack.c.b16 %v151, %v150
    %v164 = vpack.c.b16 %v153, %v152
    %v165 = vpack.c.b16 %v155, %v154
    %v166 = vpack.c.b16 %v157, %v156
    %v167 = vpack.c.b16 %v159, %v158
    %176 = vmatpush.bf16.msra.mxu0 %v167
    %177 = vmatpush.bf16.msra.mxu0 %v166
    %178 = vmatpush.bf16.msra.mxu0 %v165
    %179 = vmatpush.bf16.msra.mxu0 %v164
    %180 = vmatpush.bf16.msra.mxu0 %v163
    %181 = vmatpush.bf16.msra.mxu0 %v162
    %182 = vmatpush.bf16.msra.mxu0 %v161
    %183 = vmatpush.bf16.msra.mxu0 %v160
    %184 = vmatmul.bf16.gmra.mxu0 %v127
    %v185 = vpop.f32.mrf.mxu0
    %v186 = vadd.f32 0.0, %v185
    %v187 = vpop.f32.mrf.mxu0
    %188 = vdwg.mxu0
    %189 = vmatpush.bf16.msra.mxu0 %v167
    %190 = vmatpush.bf16.msra.mxu0 %v166
    %191 = vmatpush.bf16.msra.mxu0 %v165
    %192 = vmatpush.bf16.msra.mxu0 %v164
    %193 = vmatpush.bf16.msra.mxu0 %v163
    %194 = vmatpush.bf16.msra.mxu0 %v162
    %195 = vmatpush.bf16.msra.mxu0 %v161
    %196 = vmatpush.bf16.msra.mxu0 %v160
    %197 = vmatmul.bf16.gmra.mxu0 %v124
    %v198 = vpop.f32.mrf.mxu0
    %v199 = vadd.f32 %v186, %v198
    %v200 = vpop.f32.mrf.mxu0
    %201 = vdwg.mxu0
    %vm202 = vcmp.gt.f32.partialorder %v199, 1.0
    %v203 = vrsqrt.pop %v199
    %v204 = vmul.f32 %v203, %v199
    %v205 = vmul.f32 %v204, %v203
    %v206 = vmul.f32 0.5, %v205
    %v207 = vsub.f32 1.5, %v206
    %v208 = vmul.f32 %v203, %v207
    %vm209 = vweird.f32 %v199
    %vm210 = vweird.f32 %v203
    %vm211 = vmor %vm209, %vm210
    %v212 = vsel %vm211, %v203, %v208
    %v213 = vsel %vm202, %v212, 1.0
    %v214 = vmul.f32 %v117, %v213
    %v215 = vmul.f32 %v118, %v118
    %v216 = vpack.c.bf16 %v215, %v215
    %v217 = vunpack.c.l.bf16 %v216
    %v218 = vsub.f32 %v215, %v217
    %v219 = vpack.c.bf16 %v218, %v218
    %220 = vmatpush.bf16.msra.mxu0 %v167
    %221 = vmatpush.bf16.msra.mxu0 %v166
    %222 = vmatpush.bf16.msra.mxu0 %v165
    %223 = vmatpush.bf16.msra.mxu0 %v164
    %224 = vmatpush.bf16.msra.mxu0 %v163
    %225 = vmatpush.bf16.msra.mxu0 %v162
    %226 = vmatpush.bf16.msra.mxu0 %v161
    %227 = vmatpush.bf16.msra.mxu0 %v160
    %228 = vmatmul.bf16.gmra.mxu0 %v219
    %v229 = vpop.f32.mrf.mxu0
    %v230 = vadd.f32 0.0, %v229
    %v231 = vpop.f32.mrf.mxu0
    %232 = vdwg.mxu0
    %233 = vmatpush.bf16.msra.mxu0 %v167
    %234 = vmatpush.bf16.msra.mxu0 %v166
    %235 = vmatpush.bf16.msra.mxu0 %v165
    %236 = vmatpush.bf16.msra.mxu0 %v164
    %237 = vmatpush.bf16.msra.mxu0 %v163
    %238 = vmatpush.bf16.msra.mxu0 %v162
    %239 = vmatpush.bf16.msra.mxu0 %v161
    %240 = vmatpush.bf16.msra.mxu0 %v160
    %241 = vmatmul.bf16.gmra.mxu0 %v216
    %v242 = vpop.f32.mrf.mxu0
    %v243 = vadd.f32 %v230, %v242
    %v244 = vpop.f32.mrf.mxu0
    %245 = vdwg.mxu0
    %vm246 = vcmp.gt.f32.partialorder %v243, 1.0
    %v247 = vrsqrt.pop %v243
    %v248 = vmul.f32 %v247, %v243
    %v249 = vmul.f32 %v248, %v247
    %v250 = vmul.f32 0.5, %v249
    %v251 = vsub.f32 1.5, %v250
    %v252 = vmul.f32 %v247, %v251
    %vm253 = vweird.f32 %v243
    %vm254 = vweird.f32 %v247
    %vm255 = vmor %vm253, %vm254
    %v256 = vsel %vm255, %v247, %v252
    %v257 = vsel %vm246, %v256, 1.0
    %v258 = vmul.f32 %v118, %v257
    %v259 = vmul.f32 %v119, %v119
    %v260 = vpack.c.bf16 %v259, %v259
    %v261 = vunpack.c.l.bf16 %v260
    %v262 = vsub.f32 %v259, %v261
    %v263 = vpack.c.bf16 %v262, %v262
    %264 = vmatpush.bf16.msra.mxu0 %v167
    %265 = vmatpush.bf16.msra.mxu0 %v166
    %266 = vmatpush.bf16.msra.mxu0 %v165
    %267 = vmatpush.bf16.msra.mxu0 %v164
    %268 = vmatpush.bf16.msra.mxu0 %v163
    %269 = vmatpush.bf16.msra.mxu0 %v162
    %270 = vmatpush.bf16.msra.mxu0 %v161
    %271 = vmatpush.bf16.msra.mxu0 %v160
    %272 = vmatmul.bf16.gmra.mxu0 %v263
    %v273 = vpop.f32.mrf.mxu0
    %v274 = vadd.f32 0.0, %v273
    %v275 = vpop.f32.mrf.mxu0
    %276 = vdwg.mxu0
    %277 = vmatpush.bf16.msra.mxu0 %v167
    %278 = vmatpush.bf16.msra.mxu0 %v166
    %279 = vmatpush.bf16.msra.mxu0 %v165
    %280 = vmatpush.bf16.msra.mxu0 %v164
    %281 = vmatpush.bf16.msra.mxu0 %v163
    %282 = vmatpush.bf16.msra.mxu0 %v162
    %283 = vmatpush.bf16.msra.mxu0 %v161
    %284 = vmatpush.bf16.msra.mxu0 %v160
    %285 = vmatmul.bf16.gmra.mxu0 %v260
    %v286 = vpop.f32.mrf.mxu0
    %v287 = vadd.f32 %v274, %v286
    %v288 = vpop.f32.mrf.mxu0
    %289 = vdwg.mxu0
    %vm290 = vcmp.gt.f32.partialorder %v287, 1.0
    %v291 = vrsqrt.pop %v287
    %v292 = vmul.f32 %v291, %v287
    %v293 = vmul.f32 %v292, %v291
    %v294 = vmul.f32 0.5, %v293
    %v295 = vsub.f32 1.5, %v294
    %v296 = vmul.f32 %v291, %v295
    %vm297 = vweird.f32 %v287
    %vm298 = vweird.f32 %v291
    %vm299 = vmor %vm297, %vm298
    %v300 = vsel %vm299, %v291, %v296
    %v301 = vsel %vm290, %v300, 1.0
    %v302 = vmul.f32 %v119, %v301
    %v303 = vmul.f32 %v120, %v120
    %v304 = vpack.c.bf16 %v303, %v303
    %v305 = vunpack.c.l.bf16 %v304
    %v306 = vsub.f32 %v303, %v305
    %v307 = vpack.c.bf16 %v306, %v306
    %308 = vmatpush.bf16.msra.mxu0 %v167
    %309 = vmatpush.bf16.msra.mxu0 %v166
    %310 = vmatpush.bf16.msra.mxu0 %v165
    %311 = vmatpush.bf16.msra.mxu0 %v164
    %312 = vmatpush.bf16.msra.mxu0 %v163
    %313 = vmatpush.bf16.msra.mxu0 %v162
    %314 = vmatpush.bf16.msra.mxu0 %v161
    %315 = vmatpush.bf16.msra.mxu0 %v160
    %316 = vmatmul.bf16.gmra.mxu0 %v307
    %v317 = vpop.f32.mrf.mxu0
    %v318 = vadd.f32 0.0, %v317
    %v319 = vpop.f32.mrf.mxu0
    %320 = vdwg.mxu0
    %321 = vmatpush.bf16.msra.mxu0 %v167
    %322 = vmatpush.bf16.msra.mxu0 %v166
    %323 = vmatpush.bf16.msra.mxu0 %v165
    %324 = vmatpush.bf16.msra.mxu0 %v164
    %325 = vmatpush.bf16.msra.mxu0 %v163
    %326 = vmatpush.bf16.msra.mxu0 %v162
    %327 = vmatpush.bf16.msra.mxu0 %v161
    %328 = vmatpush.bf16.msra.mxu0 %v160
    %329 = vmatmul.bf16.gmra.mxu0 %v304
    %v330 = vpop.f32.mrf.mxu0
    %v331 = vadd.f32 %v318, %v330
    %v332 = vpop.f32.mrf.mxu0
    %333 = vdwg.mxu0
    %vm334 = vcmp.gt.f32.partialorder %v331, 1.0
    %v335 = vrsqrt.pop %v331
    %v336 = vmul.f32 %v335, %v331
    %v337 = vmul.f32 %v336, %v335
    %v338 = vmul.f32 0.5, %v337
    %v339 = vsub.f32 1.5, %v338
    %v340 = vmul.f32 %v335, %v339
    %vm341 = vweird.f32 %v331
    %vm342 = vweird.f32 %v335
    %vm343 = vmor %vm341, %vm342
    %v344 = vsel %vm343, %v335, %v340
    %v345 = vsel %vm334, %v344, 1.0
    %v346 = vmul.f32 %v120, %v345
    %v347 = vmul.f32 %v121, %v121
    %v348 = vpack.c.bf16 %v347, %v347
    %v349 = vunpack.c.l.bf16 %v348
    %v350 = vsub.f32 %v347, %v349
    %v351 = vpack.c.bf16 %v350, %v350
    %352 = vmatpush.bf16.msra.mxu0 %v167
    %353 = vmatpush.bf16.msra.mxu0 %v166
    %354 = vmatpush.bf16.msra.mxu0 %v165
    %355 = vmatpush.bf16.msra.mxu0 %v164
    %356 = vmatpush.bf16.msra.mxu0 %v163
    %357 = vmatpush.bf16.msra.mxu0 %v162
    %358 = vmatpush.bf16.msra.mxu0 %v161
    %359 = vmatpush.bf16.msra.mxu0 %v160
    %360 = vmatmul.bf16.gmra.mxu0 %v351
    %v361 = vpop.f32.mrf.mxu0
    %v362 = vadd.f32 0.0, %v361
    %v363 = vpop.f32.mrf.mxu0
    %364 = vdwg.mxu0
    %365 = vmatpush.bf16.msra.mxu0 %v167
    %366 = vmatpush.bf16.msra.mxu0 %v166
    %367 = vmatpush.bf16.msra.mxu0 %v165
    %368 = vmatpush.bf16.msra.mxu0 %v164
    %369 = vmatpush.bf16.msra.mxu0 %v163
    %370 = vmatpush.bf16.msra.mxu0 %v162
    %371 = vmatpush.bf16.msra.mxu0 %v161
    %372 = vmatpush.bf16.msra.mxu0 %v160
    %373 = vmatmul.bf16.gmra.mxu0 %v348
    %v374 = vpop.f32.mrf.mxu0
    %v375 = vadd.f32 %v362, %v374
    %v376 = vpop.f32.mrf.mxu0
    %377 = vdwg.mxu0
    %vm378 = vcmp.gt.f32.partialorder %v375, 1.0
    %v379 = vrsqrt.pop %v375
    %v380 = vmul.f32 %v379, %v375
    %v381 = vmul.f32 %v380, %v379
    %v382 = vmul.f32 0.5, %v381
    %v383 = vsub.f32 1.5, %v382
    %v384 = vmul.f32 %v379, %v383
    %vm385 = vweird.f32 %v375
    %vm386 = vweird.f32 %v379
    %vm387 = vmor %vm385, %vm386
    %v388 = vsel %vm387, %v379, %v384
    %v389 = vsel %vm378, %v388, 1.0
    %v390 = vmul.f32 %v121, %v389
    %v391 = vmul.f32 %v122, %v122
    %v392 = vpack.c.bf16 %v391, %v391
    %v393 = vunpack.c.l.bf16 %v392
    %v394 = vsub.f32 %v391, %v393
    %v395 = vpack.c.bf16 %v394, %v394
    %396 = vmatpush.bf16.msra.mxu0 %v167
    %397 = vmatpush.bf16.msra.mxu0 %v166
    %398 = vmatpush.bf16.msra.mxu0 %v165
    %399 = vmatpush.bf16.msra.mxu0 %v164
    %400 = vmatpush.bf16.msra.mxu0 %v163
    %401 = vmatpush.bf16.msra.mxu0 %v162
    %402 = vmatpush.bf16.msra.mxu0 %v161
    %403 = vmatpush.bf16.msra.mxu0 %v160
    %404 = vmatmul.bf16.gmra.mxu0 %v395
    %v405 = vpop.f32.mrf.mxu0
    %v406 = vadd.f32 0.0, %v405
    %v407 = vpop.f32.mrf.mxu0
    %408 = vdwg.mxu0
    %409 = vmatpush.bf16.msra.mxu0 %v167
    %410 = vmatpush.bf16.msra.mxu0 %v166
    %411 = vmatpush.bf16.msra.mxu0 %v165
    %412 = vmatpush.bf16.msra.mxu0 %v164
    %413 = vmatpush.bf16.msra.mxu0 %v163
    %414 = vmatpush.bf16.msra.mxu0 %v162
    %415 = vmatpush.bf16.msra.mxu0 %v161
    %416 = vmatpush.bf16.msra.mxu0 %v160
    %417 = vmatmul.bf16.gmra.mxu0 %v392
    %v418 = vpop.f32.mrf.mxu0
    %v419 = vadd.f32 %v406, %v418
    %v420 = vpop.f32.mrf.mxu0
    %421 = vdwg.mxu0
    %vm422 = vcmp.gt.f32.partialorder %v419, 1.0
    %v423 = vrsqrt.pop %v419
    %v424 = vmul.f32 %v423, %v419
    %v425 = vmul.f32 %v424, %v423
    %v426 = vmul.f32 0.5, %v425
    %v427 = vsub.f32 1.5, %v426
    %v428 = vmul.f32 %v423, %v427
    %vm429 = vweird.f32 %v419
    %vm430 = vweird.f32 %v423
    %vm431 = vmor %vm429, %vm430
    %v432 = vsel %vm431, %v423, %v428
    %v433 = vsel %vm422, %v432, 1.0
    %v434 = vmul.f32 %v122, %v433
    %v435 = vmul.f32 %v214, %v258
    %v436 = vpack.c.bf16 %v435, %v435
    %v437 = vunpack.c.l.bf16 %v436
    %v438 = vsub.f32 %v435, %v437
    %v439 = vpack.c.bf16 %v438, %v438
    %440 = vmatpush.bf16.msra.mxu0 %v167
    %441 = vmatpush.bf16.msra.mxu0 %v166
    %442 = vmatpush.bf16.msra.mxu0 %v165
    %443 = vmatpush.bf16.msra.mxu0 %v164
    %444 = vmatpush.bf16.msra.mxu0 %v163
    %445 = vmatpush.bf16.msra.mxu0 %v162
    %446 = vmatpush.bf16.msra.mxu0 %v161
    %447 = vmatpush.bf16.msra.mxu0 %v160
    %448 = vmatmul.bf16.gmra.mxu0 %v439
    %v449 = vpop.f32.mrf.mxu0
    %v450 = vadd.f32 0.0, %v449
    %v451 = vpop.f32.mrf.mxu0
    %452 = vdwg.mxu0
    %453 = vmatpush.bf16.msra.mxu0 %v167
    %454 = vmatpush.bf16.msra.mxu0 %v166
    %455 = vmatpush.bf16.msra.mxu0 %v165
    %456 = vmatpush.bf16.msra.mxu0 %v164
    %457 = vmatpush.bf16.msra.mxu0 %v163
    %458 = vmatpush.bf16.msra.mxu0 %v162
    %459 = vmatpush.bf16.msra.mxu0 %v161
    %460 = vmatpush.bf16.msra.mxu0 %v160
    %461 = vmatmul.bf16.gmra.mxu0 %v436
    %v462 = vpop.f32.mrf.mxu0
    %v463 = vadd.f32 %v450, %v462
    %v464 = vpop.f32.mrf.mxu0
    %465 = vdwg.mxu0
    %v466 = vmul.f32 %v463, %v434
    %v467 = vadd.f32 %v214, %v466
    %v468 = vmul.f32 %v302, %v346
    %v469 = vpack.c.bf16 %v468, %v468
    %v470 = vunpack.c.l.bf16 %v469
    %v471 = vsub.f32 %v468, %v470
    %v472 = vpack.c.bf16 %v471, %v471
    %473 = vmatpush.bf16.msra.mxu0 %v167
    %474 = vmatpush.bf16.msra.mxu0 %v166
    %475 = vmatpush.bf16.msra.mxu0 %v165
    %476 = vmatpush.bf16.msra.mxu0 %v164
    %477 = vmatpush.bf16.msra.mxu0 %v163
    %478 = vmatpush.bf16.msra.mxu0 %v162
    %479 = vmatpush.bf16.msra.mxu0 %v161
    %480 = vmatpush.bf16.msra.mxu0 %v160
    %481 = vmatmul.bf16.gmra.mxu0 %v472
    %v482 = vpop.f32.mrf.mxu0
    %v483 = vadd.f32 0.0, %v482
    %v484 = vpop.f32.mrf.mxu0
    %485 = vdwg.mxu0
    %486 = vmatpush.bf16.msra.mxu0 %v167
    %487 = vmatpush.bf16.msra.mxu0 %v166
    %488 = vmatpush.bf16.msra.mxu0 %v165
    %489 = vmatpush.bf16.msra.mxu0 %v164
    %490 = vmatpush.bf16.msra.mxu0 %v163
    %491 = vmatpush.bf16.msra.mxu0 %v162
    %492 = vmatpush.bf16.msra.mxu0 %v161
    %493 = vmatpush.bf16.msra.mxu0 %v160
    %494 = vmatmul.bf16.gmra.mxu0 %v469
    %v495 = vpop.f32.mrf.mxu0
    %v496 = vadd.f32 %v483, %v495
    %v497 = vpop.f32.mrf.mxu0
    %498 = vdwg.mxu0
    %v499 = vmul.f32 %v496, %v434
    %v500 = vadd.f32 %v302, %v499
    %v501 = vadd.f32 %v467, %v390
    %v502 = vsub.f32 %v501, %v500
    %v503 = vmul.f32 %v502, %v502
    %v504 = vpack.c.bf16 %v503, %v503
    %v505 = vunpack.c.l.bf16 %v504
    %v506 = vsub.f32 %v503, %v505
    %v507 = vpack.c.bf16 %v506, %v506
    %v524 = vunpack.c.l.b16 %v101
    %v525 = vunpack.c.l.b16 %v102
    %v526 = vunpack.c.l.b16 %v103
    %v527 = vunpack.c.l.b16 %v104
    %v528 = vunpack.c.l.b16 %v105
    %v529 = vunpack.c.l.b16 %v106
    %v530 = vunpack.c.l.b16 %v107
    %v531 = vunpack.c.l.b16 %v108
    %v532 = vunpack.c.l.b16 %v109
    %v533 = vunpack.c.l.b16 %v110
    %v534 = vunpack.c.l.b16 %v111
    %v535 = vunpack.c.l.b16 %v112
    %v536 = vunpack.c.l.b16 %v113
    %v537 = vunpack.c.l.b16 %v114
    %v538 = vunpack.c.l.b16 %v115
    %v539 = vunpack.c.l.b16 %v116
    %v540 = vpack.c.b16 %v525, %v524
    %v541 = vpack.c.b16 %v527, %v526
    %v542 = vpack.c.b16 %v529, %v528
    %v543 = vpack.c.b16 %v531, %v530
    %v544 = vpack.c.b16 %v533, %v532
    %v545 = vpack.c.b16 %v535, %v534
    %v546 = vpack.c.b16 %v537, %v536
    %v547 = vpack.c.b16 %v539, %v538
    %556 = vmatpush.bf16.msra.mxu0 %v547
    %557 = vmatpush.bf16.msra.mxu0 %v546
    %558 = vmatpush.bf16.msra.mxu0 %v545
    %559 = vmatpush.bf16.msra.mxu0 %v544
    %560 = vmatpush.bf16.msra.mxu0 %v543
    %561 = vmatpush.bf16.msra.mxu0 %v542
    %562 = vmatpush.bf16.msra.mxu0 %v541
    %563 = vmatpush.bf16.msra.mxu0 %v540
    %564 = vmatmul.bf16.gmra.mxu0 %v507
    %v565 = vpop.f32.mrf.mxu0
    %v566 = vadd.f32 0.0, %v565
    %v567 = vpop.f32.mrf.mxu0
    %568 = vdwg.mxu0
    %569 = vmatpush.bf16.msra.mxu0 %v547
    %570 = vmatpush.bf16.msra.mxu0 %v546
    %571 = vmatpush.bf16.msra.mxu0 %v545
    %572 = vmatpush.bf16.msra.mxu0 %v544
    %573 = vmatpush.bf16.msra.mxu0 %v543
    %574 = vmatpush.bf16.msra.mxu0 %v542
    %575 = vmatpush.bf16.msra.mxu0 %v541
    %576 = vmatpush.bf16.msra.mxu0 %v540
    %577 = vmatmul.bf16.gmra.mxu0 %v504
    %v578 = vpop.f32.mrf.mxu0
    %v579 = vadd.f32 %v566, %v578
    %v580 = vpop.f32.mrf.mxu0
    %581 = vdwg.mxu0
    %v582 = vrsqrt.pop %v579
    %v583 = vmul.f32 %v582, %v579
    %v584 = vmul.f32 %v583, %v582
    %v585 = vmul.f32 0.5, %v584
    %v586 = vsub.f32 1.5, %v585
    %v587 = vmul.f32 %v582, %v586
    %v588 = vmul.f32 %v579, %v587
    %vm589 = vcmp.eq.f32.partialorder %v579, inf
    %v590 = vsel %vm589, %v579, %v588
    %vm591 = vcmp.eq.f32.partialorder %v579, 0.0
    %v592 = vand.u32 %v579, 2147483648
    %v593 = vsel %vm591, %v592, %v590
    %vm594 = vcmask 25600
    %595 = vst.msk [vmem:[#allocation10] sm:$0x3] %vm594, %v593
    // Predicated region
    $region50: #{tpu_custom_call.1} parent=1 // pred_check
      _
    $region51: #{tpu_custom_call.1} parent=1 // pred_check_branch
      %597 = sbr.rel (0) target = $region53
    $region52: #{tpu_custom_call.1} parent=1 // pred_region
      %599 = vsyncadd [#allocation4], 0
      %s601 = sshll.u32 [#allocation10], 4
      %s602 = int_to_ptr.vmem [resolvable:$true] %s601
      %s603 = sshll.u32 %s8, 4
      %s604 = int_to_ptr.hbm [resolvable:$true] %s603
      %606 = dma.vmem_to_hbm [thread:$0]  %s602, 32, %s604, [#allocation4]
    $region53: #{tpu_custom_call.1} parent=1 // pred_fallthru
      _
    // Predicated region
    $region54: #{tpu_custom_call.1} parent=1 // pred_check
      _
    $region55: #{tpu_custom_call.1} parent=1 // pred_check_branch
      %608 = sbr.rel (0) target = $region57
    $region56: #{tpu_custom_call.1} parent=1 // pred_region
      %610 = dma.done [#allocation4], 32
    $region57: #{tpu_custom_call.1} parent=1 // pred_fallthru
      _
    %611 = vsyncpa [#allocation3], 1
    %612 = vsyncpa [#allocation6], 1
    %613 = vsyncpa [#allocation9], 1
    %614 = vsyncpa [#allocation4], 1

</llo_original>
